<compile_context>
chip_gen: v6e
topology: v6e:2x2x1
jax: 0.10.0
libtpu: 0.0.40
codegen_flags: <defaults>
</compile_context>

<pallas_src>
import functools
import math

import jax
import jax.numpy as jnp
from jax import lax
from jax.experimental import pallas as pl
from jax.experimental.pallas import tpu as pltpu


def _round_up(x, m):
    return ((x + m - 1) // m) * m


# --------------------------------------------------------------------------
# Path 1: small vocab, table resident in VMEM, dynamic-index row gather.
# --------------------------------------------------------------------------
def _vmem_table_kernel(ids_ref, table_ref, out_ref, *,
                       scale, tokens_per_step, rows_per_group):
    """ids_ref: SMEM (N_pad,) int32 (scalar prefetch)
       table_ref: VMEM (V, D) (resident: same block every grid step)
       out_ref: VMEM (T, D) output block
    """
    T = tokens_per_step
    G = rows_per_group
    base = pl.program_id(0) * T

    def body(g, carry):
        start = pl.multiple_of(g * G, G)          # aligned group offset
        rows = [table_ref[pl.ds(ids_ref[base + start + j], 1), :]
                for j in range(G)]
        grp = jnp.concatenate(rows, axis=0).astype(jnp.float32) * scale
        out_ref[pl.ds(start, G), :] = grp.astype(out_ref.dtype)
        return carry

    lax.fori_loop(0, T // G, body, 0, unroll=False)


# --------------------------------------------------------------------------
# Path 2: large vocab, table in HBM, manual double-buffered DMA row gather.
# --------------------------------------------------------------------------
def _hbm_gather_kernel(ids_ref, table_ref, out_ref, buf, sem, *,
                       scale, tokens_per_step, steps_per_chunk):
    """ids_ref: SMEM (N_pad,) int32 (scalar prefetch)
       table_ref: HBM (V, D) raw ref (manual DMA)
       out_ref: VMEM (T, D) output block
       buf: VMEM (2, T, D) double buffer
       sem: DMA semaphores (2,) -- one per slot
    """
    T = tokens_per_step
    chunk = pl.program_id(0)
    step = pl.program_id(1)
    cur_block = chunk * steps_per_chunk + step
    slot = step % 2

    def fetch(block_idx, slot_idx):
        base = block_idx * T

        def issue(t, carry):
            row = ids_ref[base + t]
            pltpu.make_async_copy(
                table_ref.at[pl.ds(row, 1), :],
                buf.at[slot_idx, pl.ds(t, 1), :],
                sem.at[slot_idx]).start()
            return carry

        lax.fori_loop(0, T, issue, 0, unroll=False)

    # Prime the pipeline at the start of each chunk (every chunk primes itself,
    # so a core-parallel outer axis stays correct).
    @pl.when(step == 0)
    def _():
        fetch(cur_block, slot)

    # Prefetch the next step's rows into the other slot (within this chunk).
    @pl.when(step + 1 < steps_per_chunk)
    def _():
        fetch(cur_block + 1, 1 - slot)

    # Single wait for all T row copies landing in this slot: the T row signals
    # add up to exactly one full (T, D) slot worth of bytes, so a full-slot
    # wait descriptor consumes them all at once (src is irrelevant for wait).
    pltpu.make_async_copy(buf.at[1 - slot], buf.at[slot], sem.at[slot]).wait()

    # Fused sqrt(d_model) scale + store of the lane-dense (T, D) output block.
    out_ref[...] = (buf[slot].astype(jnp.float32) * scale).astype(out_ref.dtype)


# --------------------------------------------------------------------------
# Wrapper
# --------------------------------------------------------------------------
def token_embedding(ids, table, d_model=None, *,
                    tokens_per_step=None,
                    table_in_vmem=None,
                    core_parallel=False,
                    vmem_table_limit_bytes=4 * 1024 * 1024):
    """ids: (...,) int array, table: (V, D) -> (..., D) = table[ids] * sqrt(d_model)."""
    V, D = table.shape
    if d_model is None:
        d_model = D
    scale = math.sqrt(float(d_model))
    itemsize = jnp.dtype(table.dtype).itemsize
    align = 16 if itemsize < 4 else 8           # sublane alignment per dtype

    batch_shape = ids.shape
    N = math.prod(batch_shape) if batch_shape else 1

    # Clamp ids so a bad id can never turn into an out-of-bounds access.
    ids_flat = jnp.clip(ids.reshape(-1).astype(jnp.int32), 0, V - 1)

    # ---- tile size: the primary perf knob (sized to VMEM / HBM roofline) ----
    if tokens_per_step is None:
        row_bytes = D * itemsize
        T = min(256, max(align, (512 * 1024) // max(row_bytes, 1)))
    else:
        T = int(tokens_per_step)
    T = max(align, (T // align) * align)
    T = min(T, _round_up(N, align))

    # Pad token count to a multiple of T (padded slots gather row 0, sliced off).
    N_pad = _round_up(N, T)
    if N_pad != N:
        ids_flat = jnp.concatenate(
            [ids_flat, jnp.zeros((N_pad - N,), jnp.int32)])
    num_blocks = N_pad // T

    # TODO(synk): for very long sequences, stage ids in HBM and DMA per-chunk
    # id blocks into SMEM scratch instead of scalar-prefetching the full vector.

    table_bytes = V * D * itemsize
    if table_in_vmem is None:
        table_in_vmem = table_bytes <= vmem_table_limit_bytes

    if table_in_vmem:
        kernel = functools.partial(
            _vmem_table_kernel, scale=scale, tokens_per_step=T,
            rows_per_group=align)
        grid_spec = pltpu.PrefetchScalarGridSpec(
            num_scalar_prefetch=1,                       # ids -> SMEM
            grid=(num_blocks,),
            in_specs=[pl.BlockSpec((V, D), lambda i, ids_s: (0, 0))],  # VMEM-resident
            out_specs=pl.BlockSpec((T, D), lambda i, ids_s: (i, 0)),
            scratch_shapes=[])
        dim_sem = ("arbitrary",)
    else:
        chunks = 2 if (core_parallel and num_blocks % 2 == 0) else 1
        spc = num_blocks // chunks                       # steps per chunk
        kernel = functools.partial(
            _hbm_gather_kernel, scale=scale, tokens_per_step=T,
            steps_per_chunk=spc)
        grid_spec = pltpu.PrefetchScalarGridSpec(
            num_scalar_prefetch=1,                       # ids -> SMEM
            grid=(chunks, spc),
            in_specs=[pl.BlockSpec(memory_space=pl.ANY)],  # table stays in HBM
            out_specs=pl.BlockSpec((T, D), lambda c, s, ids_s: (c * spc + s, 0)),
            scratch_shapes=[
                pltpu.VMEM((2, T, D), table.dtype),      # double-buffered gather
                pltpu.SemaphoreType.DMA((2,)),           # one semaphore per slot
            ])
        dim_sem = ((pltpu.CORE_PARALLEL if chunks > 1 else "arbitrary"),
                   "arbitrary")

    # VMEM working set: gather scratch + pipelined output (+ resident table).
    work_bytes = 4 * T * D * itemsize + (table_bytes if table_in_vmem else 0)
    vmem_limit = None
    if work_bytes > 12 * 1024 * 1024:
        vmem_limit = min(work_bytes + (8 << 20), 64 << 20)

    out = pl.pallas_call(
        kernel,
        out_shape=jax.ShapeDtypeStruct((N_pad, D), table.dtype),
        grid_spec=grid_spec,
        compiler_params=pltpu.CompilerParams(
            dimension_semantics=dim_sem,
            vmem_limit_bytes=vmem_limit),
    )(ids_flat, table)

    return out[:N].reshape(*batch_shape, D)


if __name__ == "__main__":
    vocab_size = 64
    d_model = 128            # lane-dense last dim
    padding_idx = 0

    key = jax.random.PRNGKey(0)
    k_w, k_ids1, k_ids2 = jax.random.split(key, 3)

    # nn.Embedding default init: N(0, 1); row `padding_idx` zeroed.
    table = jax.random.normal(k_w, (vocab_size, d_model), dtype=jnp.float32)
    table = table.at[padding_idx].set(0.0)

    # Case 1: small table -> auto-dispatches to the VMEM-resident fast path.
    B, S = 2, 16
    ids = jax.random.randint(k_ids1, (B, S), 0, vocab_size, dtype=jnp.int32)
    ids = ids.at[0, 0].set(padding_idx)          # exercise the zeroed row
    out_fast = jax.block_until_ready(token_embedding(ids, table, d_model))
    ref = table[ids] * math.sqrt(d_model)
    assert out_fast.shape == (B, S, d_model)
    assert jnp.allclose(out_fast, ref, atol=1e-5, rtol=1e-5)

    # Case 2: force the HBM row-gather path (large-vocab code path), with a
    # token count that also exercises padding of the token axis.
    B2, S2 = 2, 13
    ids2 = jax.random.randint(k_ids2, (B2, S2), 0, vocab_size, dtype=jnp.int32)
    out_gather = jax.block_until_ready(
        token_embedding(ids2, table, d_model, table_in_vmem=False))
    ref2 = table[ids2] * math.sqrt(d_model)
    assert out_gather.shape == (B2, S2, d_model)
    assert jnp.allclose(out_gather, ref2, atol=1e-5, rtol=1e-5)

    print("KERNEL_OK")
</pallas_src>

<mosaic_0001>
module attributes {stable_mosaic.version = 11 : i64} {
  func.func @_vmem_table_kernel(%arg0: i32, %arg1: memref<32xi32, #tpu.memory_space<smem>>, %arg2: memref<64x128xf32, #tpu.memory_space<vmem>>, %arg3: memref<32x128xf32, #tpu.memory_space<vmem>>) attributes {dimension_semantics = [#tpu.dimension_semantics<arbitrary>], iteration_bounds = array<i64: 1>, scalar_prefetch = 1 : i64, scratch_operands = 0 : i64, tpu.core_type = #tpu.core_type<tc>, window_params = [{pipeline_mode = #tpu.pipeline_mode<synchronous>, transform_indices = @transform_0, window_bounds = array<i64: 64, 128>}, {transform_indices = @transform_1, window_bounds = array<i64: 32, 128>}]} {
    %c32_i32 = arith.constant 32 : i32
    %0 = arith.muli %arg0, %c32_i32 : i32
    %c0_i32 = arith.constant 0 : i32
    %c4_i32 = arith.constant 4 : i32
    %1 = arith.addi %c0_i32, %c4_i32 : i32
    %c1_i32 = arith.constant 1 : i32
    scf.for %arg4 = %c0_i32 to %1 step %c1_i32  : i32 {
      %c8_i32 = arith.constant 8 : i32
      %2 = arith.muli %arg4, %c8_i32 : i32
      %3 = tpu.assume_multiple %2, 8 : i32
      %4 = arith.addi %0, %3 : i32
      %c0_i32_1 = arith.constant 0 : i32
      %5 = arith.addi %4, %c0_i32_1 : i32
      %6 = arith.index_cast %5 : i32 to index
      %7 = memref.load %arg1[%6] : memref<32xi32, #tpu.memory_space<smem>>
      %8 = arith.index_cast %7 : i32 to index
      %c0 = arith.constant 0 : index
      %9 = vector.load %arg2[%8, %c0] : memref<64x128xf32, #tpu.memory_space<vmem>>, vector<1x128xf32>
      %10 = arith.addi %0, %3 : i32
      %c1_i32_2 = arith.constant 1 : i32
      %11 = arith.addi %10, %c1_i32_2 : i32
      %12 = arith.index_cast %11 : i32 to index
      %13 = memref.load %arg1[%12] : memref<32xi32, #tpu.memory_space<smem>>
      %14 = arith.index_cast %13 : i32 to index
      %c0_3 = arith.constant 0 : index
      %15 = vector.load %arg2[%14, %c0_3] : memref<64x128xf32, #tpu.memory_space<vmem>>, vector<1x128xf32>
      %16 = arith.addi %0, %3 : i32
      %c2_i32 = arith.constant 2 : i32
      %17 = arith.addi %16, %c2_i32 : i32
      %18 = arith.index_cast %17 : i32 to index
      %19 = memref.load %arg1[%18] : memref<32xi32, #tpu.memory_space<smem>>
      %20 = arith.index_cast %19 : i32 to index
      %c0_4 = arith.constant 0 : index
      %21 = vector.load %arg2[%20, %c0_4] : memref<64x128xf32, #tpu.memory_space<vmem>>, vector<1x128xf32>
      %22 = arith.addi %0, %3 : i32
      %c3_i32 = arith.constant 3 : i32
      %23 = arith.addi %22, %c3_i32 : i32
      %24 = arith.index_cast %23 : i32 to index
      %25 = memref.load %arg1[%24] : memref<32xi32, #tpu.memory_space<smem>>
      %26 = arith.index_cast %25 : i32 to index
      %c0_5 = arith.constant 0 : index
      %27 = vector.load %arg2[%26, %c0_5] : memref<64x128xf32, #tpu.memory_space<vmem>>, vector<1x128xf32>
      %28 = arith.addi %0, %3 : i32
      %c4_i32_6 = arith.constant 4 : i32
      %29 = arith.addi %28, %c4_i32_6 : i32
      %30 = arith.index_cast %29 : i32 to index
      %31 = memref.load %arg1[%30] : memref<32xi32, #tpu.memory_space<smem>>
      %32 = arith.index_cast %31 : i32 to index
      %c0_7 = arith.constant 0 : index
      %33 = vector.load %arg2[%32, %c0_7] : memref<64x128xf32, #tpu.memory_space<vmem>>, vector<1x128xf32>
      %34 = arith.addi %0, %3 : i32
      %c5_i32 = arith.constant 5 : i32
      %35 = arith.addi %34, %c5_i32 : i32
      %36 = arith.index_cast %35 : i32 to index
      %37 = memref.load %arg1[%36] : memref<32xi32, #tpu.memory_space<smem>>
      %38 = arith.index_cast %37 : i32 to index
      %c0_8 = arith.constant 0 : index
      %39 = vector.load %arg2[%38, %c0_8] : memref<64x128xf32, #tpu.memory_space<vmem>>, vector<1x128xf32>
      %40 = arith.addi %0, %3 : i32
      %c6_i32 = arith.constant 6 : i32
      %41 = arith.addi %40, %c6_i32 : i32
      %42 = arith.index_cast %41 : i32 to index
      %43 = memref.load %arg1[%42] : memref<32xi32, #tpu.memory_space<smem>>
      %44 = arith.index_cast %43 : i32 to index
      %c0_9 = arith.constant 0 : index
      %45 = vector.load %arg2[%44, %c0_9] : memref<64x128xf32, #tpu.memory_space<vmem>>, vector<1x128xf32>
      %46 = arith.addi %0, %3 : i32
      %c7_i32 = arith.constant 7 : i32
      %47 = arith.addi %46, %c7_i32 : i32
      %48 = arith.index_cast %47 : i32 to index
      %49 = memref.load %arg1[%48] : memref<32xi32, #tpu.memory_space<smem>>
      %50 = arith.index_cast %49 : i32 to index
      %c0_10 = arith.constant 0 : index
      %51 = vector.load %arg2[%50, %c0_10] : memref<64x128xf32, #tpu.memory_space<vmem>>, vector<1x128xf32>
      %52 = tpu.concatenate %9, %15, %21, %27, %33, %39, %45, %51 in 0 : vector<1x128xf32>, vector<1x128xf32>, vector<1x128xf32>, vector<1x128xf32>, vector<1x128xf32>, vector<1x128xf32>, vector<1x128xf32>, vector<1x128xf32> -> vector<8x128xf32>
      %cst = arith.constant 11.3137083 : f32
      %53 = vector.broadcast %cst : f32 to vector<8x128xf32>
      %54 = arith.mulf %52, %53 : vector<8x128xf32>
      %55 = arith.index_cast %3 : i32 to index
      %c0_11 = arith.constant 0 : index
      %56 = vector.load %arg3[%55, %c0_11] : memref<32x128xf32, #tpu.memory_space<vmem>>, vector<8x128xf32>
      tpu.vector_store %arg3[%55, %c0_11], %54 {strides = array<i32>} : memref<32x128xf32, #tpu.memory_space<vmem>>, vector<8x128xf32>,
    }
    %c4_i32_0 = arith.constant 4 : i32
    return
  }
  func.func @transform_0(%arg0: i32, %arg1: memref<32xi32, #tpu.memory_space<smem>>) -> (i32, i32) {
    %c0_i32 = arith.constant 0 : i32
    %c0_i32_0 = arith.constant 0 : i32
    %c0_i32_1 = arith.constant 0 : i32
    return %c0_i32, %c0_i32_0 : i32, i32
  }
  func.func @transform_1(%arg0: i32, %arg1: memref<32xi32, #tpu.memory_space<smem>>) -> (i32, i32) {
    %c0_i32 = arith.constant 0 : i32
    %c0_i32_0 = arith.constant 0 : i32
    return %arg0, %c0_i32 : i32, i32
  }
}

</mosaic_0001>

<llo_original>
// kernel: tpu_custom_call.1
$region0: #{tpu_custom_call.1}
  #allocation0 [shape = 'u32[]', space=smem, size = 0x4, offset = 0x4, fixed_abs, tag = 'smem constant byte address 0x4 - core index']
  #allocation1 [shape = 'u32[144,128]{1,0:T(1,128)}', space=vmem, size = 0x12000, scoped, tag = 'internal scratch']
  #allocation2 [shape = 's32[1]{0}', space=sflag, size = 0x4, scoped, tag = 'scoped memory for tpu_custom_call.1']
  #allocation3 [shape = 'u8[512]{0}', space=smem, size = 0x200, scoped, tag = 'prefetched SMEM operand 0']
  %s0 = inlined_call_operand.hbm [shape: s32[32], index: 0, kind: input, shape index: {}]
  %s1 = inlined_call_operand.hbm [shape: f32[64,128], index: 1, kind: input, shape index: {}]
  %s2 = inlined_call_operand.hbm [shape: f32[32,128], index: 2, kind: output, shape index: {}]
  %s3 = sld [smem:[#allocation0]]
  $region25: #{tpu_custom_call.1} parent=0
    _
  %s5 = ssub.s32 1, %s3
  %s6 = scalar_select 0, %s5, %s3
  %8 = dma.hbm_to_smem %s0, 16, [#allocation3], [#allocation2]
  %9 = dma.done [#allocation2], 16
  %10 = sfence
  $region1: #{tpu_custom_call.1} parent=0
    #allocation4 [shape = 'u8[32768]{0}', space=vmem, size = 0x8000, scoped, tag = 'input window, operand 1, single buffered']
    #allocation5 [shape = 's32[1]{0}', space=sflag, size = 0x4, scoped, tag = 'scoped memory for tpu_custom_call.1']
    #allocation6 [shape = 's32[1]{0}', space=sflag, size = 0x4, scoped, tag = 'scoped memory for tpu_custom_call.1']
    #allocation7 [shape = 'u8[16384]{0}', space=vmem, size = 0x4000, scoped, tag = 'output window, operand 0, single buffered']
    %11 = vsyncpa [#allocation5], 0
    %12 = vsyncpa [#allocation6], 0
    // Predicated region
    $region2: #{tpu_custom_call.1} parent=1 // pred_check
      _
    $region3: #{tpu_custom_call.1} parent=1 // pred_check_branch
      %14 = sbr.rel (0) target = $region5
    $region4: #{tpu_custom_call.1} parent=1 // pred_region
      %s16 = ssub.s32 1024, 1024
      %17 = vsyncadd [#allocation5], %s16
      %s18 = sshll.u32 [#allocation4], 4
      %s19 = int_to_ptr.vmem [resolvable:$true] %s18
      %24 = dma.hbm_to_vmem [thread:$0]  %s1, 1024, %s19, [#allocation5], 128, 128, 8
    $region5: #{tpu_custom_call.1} parent=1 // pred_fallthru
      _
    // Predicated region
    $region6: #{tpu_custom_call.1} parent=1 // pred_check
      _
    $region7: #{tpu_custom_call.1} parent=1 // pred_check_branch
      %26 = sbr.rel (0) target = $region9
    $region8: #{tpu_custom_call.1} parent=1 // pred_region
      %27 = dma.done [#allocation5], 1024
    $region9: #{tpu_custom_call.1} parent=1 // pred_fallthru
      _
    %s28 = smul.u32 0, 32
    loop: start=0, step=1, limit=4
    $region10: #{tpu_custom_call.1} parent=1 // loop_pre_header
      _
    $region11: #{tpu_custom_call.1} parent=1 // loop_header
      %s30 = sphi 0, %s34
      %p31 = scmp.ge.s32.totalorder %s30, 4
    $region12: #{tpu_custom_call.1} parent=1 // loop_header_branch
      %33 = sbr.rel (%p31) target = $region16
    $region13: #{tpu_custom_call.1} parent=1 // loop_body
      %s35 = smul.u32 %s30, 8
      %s36 = sadd.s32 %s28, %s35
      %s37 = sld [smem:[#allocation3 + %s36]]
      %s38 = scalar_lea.vmem [#allocation4], %s37
      %v39 = vld [vmem:[%s38] sm:$0x1]
      %s40 = sadd.s32 %s36, 1
      %s41 = sld [smem:[#allocation3 + %s40]]
      %s42 = scalar_lea.vmem [#allocation4], %s41
      %v43 = vld [vmem:[%s42] sm:$0x1]
      %s44 = sadd.s32 %s36, 2
      %s45 = sld [smem:[#allocation3 + %s44]]
      %s46 = scalar_lea.vmem [#allocation4], %s45
      %v47 = vld [vmem:[%s46] sm:$0x1]
      %s48 = sadd.s32 %s36, 3
      %s49 = sld [smem:[#allocation3 + %s48]]
      %s50 = scalar_lea.vmem [#allocation4], %s49
      %v51 = vld [vmem:[%s50] sm:$0x1]
      %s52 = sadd.s32 %s36, 4
      %s53 = sld [smem:[#allocation3 + %s52]]
      %s54 = scalar_lea.vmem [#allocation4], %s53
      %v55 = vld [vmem:[%s54] sm:$0x1]
      %s56 = sadd.s32 %s36, 5
      %s57 = sld [smem:[#allocation3 + %s56]]
      %s58 = scalar_lea.vmem [#allocation4], %s57
      %v59 = vld [vmem:[%s58] sm:$0x1]
      %s60 = sadd.s32 %s36, 6
      %s61 = sld [smem:[#allocation3 + %s60]]
      %s62 = scalar_lea.vmem [#allocation4], %s61
      %v63 = vld [vmem:[%s62] sm:$0x1]
      %s64 = sadd.s32 %s36, 7
      %s65 = sld [smem:[#allocation3 + %s64]]
      %s66 = scalar_lea.vmem [#allocation4], %s65
      %v67 = vld [vmem:[%s66] sm:$0x1]
      %v69 = vrot.slane %v43, 7
      %v72 = vrot.slane %v47, 6
      %v75 = vrot.slane %v51, 5
      %v78 = vrot.slane %v55, 4
      %v81 = vrot.slane %v59, 3
      %v84 = vrot.slane %v63, 2
      %v87 = vrot.slane %v67, 1
      %vm89 = vcmask 1040384
      %v90 = vsel %vm89, %v39, %v69
      %vm91 = vcmask 1041408
      %v92 = vsel %vm91, %v90, %v72
      %vm93 = vcmask 1042432
      %v94 = vsel %vm93, %v92, %v75
      %vm95 = vcmask 1043456
      %v96 = vsel %vm95, %v94, %v78
      %vm97 = vcmask 1044480
      %v98 = vsel %vm97, %v96, %v81
      %vm99 = vcmask 1045504
      %v100 = vsel %vm99, %v98, %v84
      %vm101 = vcmask 1046528
      %v102 = vsel %vm101, %v100, %v87
      %v103 = vmul.f32 %v102, 11.313708
      %s104 = scalar_lea.vmem [#allocation7], %s35
      %105 = vst [vmem:[%s104] sm:$0xff] %v103
    $region14: #{tpu_custom_call.1} parent=1 // loop_footer
      %s34 = sadd.s32 1, %s30
    $region15: #{tpu_custom_call.1} parent=1 // loop_footer_branch
      %29 = sbr.rel target = $region11
    $region16: #{tpu_custom_call.1} parent=1 // loop_exit
      _
    // Predicated region
    $region17: #{tpu_custom_call.1} parent=1 // pred_check
      _
    $region18: #{tpu_custom_call.1} parent=1 // pred_check_branch
      %107 = sbr.rel (0) target = $region20
    $region19: #{tpu_custom_call.1} parent=1 // pred_region
      %s109 = ssub.s32 512, 512
      %110 = vsyncadd [#allocation6], %s109
      %s111 = sshll.u32 [#allocation7], 4
      %s112 = int_to_ptr.vmem [resolvable:$true] %s111
      %117 = dma.vmem_to_hbm [thread:$0]  %s112, 512, %s2, [#allocation6], 128, 128, 8
    $region20: #{tpu_custom_call.1} parent=1 // pred_fallthru
      _
    // Predicated region
    $region21: #{tpu_custom_call.1} parent=1 // pred_check
      _
    $region22: #{tpu_custom_call.1} parent=1 // pred_check_branch
      %119 = sbr.rel (0) target = $region24
    $region23: #{tpu_custom_call.1} parent=1 // pred_region
      %120 = dma.done [#allocation6], 512
    $region24: #{tpu_custom_call.1} parent=1 // pred_fallthru
      _
    %121 = vsyncpa [#allocation5], 1
    %122 = vsyncpa [#allocation6], 1

</llo_original>
